<compile_context>
chip_gen: v5e
topology: v5e:2x2
jax: 0.10.0
libtpu: 0.0.40
codegen_flags: <defaults>
</compile_context>

<pallas_src>
import jax
import jax.numpy as jnp
from jax.experimental import pallas as pl
from jax.experimental.pallas import tpu as pltpu

# Deterministic "parameters" of the module (__init__ takes a callable g and a
# float L); fixed in-script.
L = 1.5

LANES = 128           # vreg lane width
SUBLANES = 8          # f32 sublane count
MAX_BLOCK_ROWS = 512  # 2 * 512 * 128 * 4 B = 512 KiB per input block


def g_fn(t):
    # known (time-dependent) gravity callable
    return 9.81 * (1.0 + 0.1 * jnp.sin(t))


def _vf_kernel(coef_ref, z_ref, out_ref):
    # coef_ref: SMEM (1,) float32, holds -(g(t)/L)
    # z_ref:    VMEM (2, block_rows, 128)   [0] = phi slab, [1] = omega slab
    # out_ref:  VMEM (2, block_rows, 128)   [0] = dphi/dt,  [1] = domega/dt
    coef = coef_ref[0]
    out_ref[0] = z_ref[1]  # dphi/dt = omega (pure pass-through, VPU copy)
    out_ref[1] = (coef * jnp.sin(z_ref[0].astype(jnp.float32))).astype(out_ref.dtype)


@jax.jit
def pendulum_vf(t, z):
    """t: scalar, z: (B, 2) float -> (B, 2), matching PendulumVf.forward."""
    B = z.shape[0]
    dtype = z.dtype

    # Scalar coefficient -(g(t)/L), computed once in float32 regardless of z dtype.
    t32 = jnp.asarray(t, jnp.float32)
    coef = jnp.reshape(-(g_fn(t32) / L), (1,)).astype(jnp.float32)

    # Lane/sublane-dense layout: (2, rows, 128) with rows a multiple of the block.
    rows = max(SUBLANES, -(-B // LANES))
    rows = -(-rows // SUBLANES) * SUBLANES
    block_rows = min(MAX_BLOCK_ROWS, rows)
    rows = -(-rows // block_rows) * block_rows
    padded = rows * LANES
    n_blocks = rows // block_rows

    # (B, 2) -> (2, B) -> zero-pad lanes -> (2, rows, 128) contiguous slab.
    z3 = jnp.pad(z.T, ((0, 0), (0, padded - B))).reshape(2, rows, LANES)

    out3 = pl.pallas_call(
        _vf_kernel,
        out_shape=jax.ShapeDtypeStruct((2, rows, LANES), dtype),
        grid_spec=pltpu.PrefetchScalarGridSpec(
            num_scalar_prefetch=0,
            grid=(n_blocks,),
            in_specs=[
                pl.BlockSpec(memory_space=pltpu.MemorySpace.SMEM),        # coef scalar
                pl.BlockSpec((2, block_rows, LANES), lambda i: (0, i, 0)),  # z slab
            ],
            out_specs=pl.BlockSpec((2, block_rows, LANES), lambda i: (0, i, 0)),
        ),
        compiler_params=pltpu.CompilerParams(
            dimension_semantics=("parallel",),
        ),
    )(coef, z3)

    # (2, rows, 128) -> (2, padded) -> drop padding -> (B, 2)
    return out3.reshape(2, padded)[:, :B].T


def pendulum_vf_ref(t, z):
    """Pure-JAX reference mirroring the PyTorch forward."""
    phi = z[:, 0]
    omega = z[:, 1]
    g = g_fn(t)
    return jnp.stack([omega, -(g / L) * jnp.sin(phi)], axis=1)


if __name__ == "__main__":
    key = jax.random.PRNGKey(0)
    B = 8
    z = jax.random.normal(key, (B, 2), dtype=jnp.float32)
    t = jnp.float32(0.3)

    out = jax.block_until_ready(pendulum_vf(t, z))
    ref = pendulum_vf_ref(t, z)

    assert out.shape == (B, 2), out.shape
    assert jnp.allclose(out, ref, atol=1e-5, rtol=1e-5), (out, ref)
    print("KERNEL_OK")
</pallas_src>

<mosaic_0001>
module attributes {stable_mosaic.version = 11 : i64} {
  func.func @_vf_kernel(%arg0: i32, %arg1: memref<1xf32, #tpu.memory_space<smem>>, %arg2: memref<2x8x128xf32, #tpu.memory_space<vmem>>, %arg3: memref<2x8x128xf32, #tpu.memory_space<vmem>>) attributes {dimension_semantics = [#tpu.dimension_semantics<parallel>], iteration_bounds = array<i64: 1>, scalar_prefetch = 0 : i64, scratch_operands = 0 : i64, tpu.core_type = #tpu.core_type<tc>, window_params = [{transform_indices = @transform_0, window_bounds = array<i64: 1>}, {transform_indices = @transform_1, window_bounds = array<i64: 2, 8, 128>}, {transform_indices = @transform_2, window_bounds = array<i64: 2, 8, 128>}]} {
    %c0 = arith.constant 0 : index
    %0 = memref.load %arg1[%c0] : memref<1xf32, #tpu.memory_space<smem>>
    %c1 = arith.constant 1 : index
    %c0_0 = arith.constant 0 : index
    %c0_1 = arith.constant 0 : index
    %1 = vector.load %arg2[%c1, %c0_0, %c0_1] : memref<2x8x128xf32, #tpu.memory_space<vmem>>, vector<1x8x128xf32>
    %2 = vector.shape_cast %1 : vector<1x8x128xf32> to vector<8x128xf32>
    %c0_2 = arith.constant 0 : index
    %c0_3 = arith.constant 0 : index
    %c0_4 = arith.constant 0 : index
    %3 = vector.load %arg3[%c0_2, %c0_3, %c0_4] : memref<2x8x128xf32, #tpu.memory_space<vmem>>, vector<1x8x128xf32>
    %4 = vector.shape_cast %3 : vector<1x8x128xf32> to vector<8x128xf32>
    %5 = vector.shape_cast %2 : vector<8x128xf32> to vector<1x8x128xf32>
    tpu.vector_store %arg3[%c0_2, %c0_3, %c0_4], %5 {strides = array<i32>} : memref<2x8x128xf32, #tpu.memory_space<vmem>>, vector<1x8x128xf32>,
    %c0_5 = arith.constant 0 : index
    %c0_6 = arith.constant 0 : index
    %c0_7 = arith.constant 0 : index
    %6 = vector.load %arg2[%c0_5, %c0_6, %c0_7] : memref<2x8x128xf32, #tpu.memory_space<vmem>>, vector<1x8x128xf32>
    %7 = vector.shape_cast %6 : vector<1x8x128xf32> to vector<8x128xf32>
    %8 = math.sin %7 : vector<8x128xf32>
    %9 = vector.broadcast %0 : f32 to vector<8x128xf32>
    %10 = arith.mulf %9, %8 : vector<8x128xf32>
    %c1_8 = arith.constant 1 : index
    %c0_9 = arith.constant 0 : index
    %c0_10 = arith.constant 0 : index
    %11 = vector.load %arg3[%c1_8, %c0_9, %c0_10] : memref<2x8x128xf32, #tpu.memory_space<vmem>>, vector<1x8x128xf32>
    %12 = vector.shape_cast %11 : vector<1x8x128xf32> to vector<8x128xf32>
    %13 = vector.shape_cast %10 : vector<8x128xf32> to vector<1x8x128xf32>
    tpu.vector_store %arg3[%c1_8, %c0_9, %c0_10], %13 {strides = array<i32>} : memref<2x8x128xf32, #tpu.memory_space<vmem>>, vector<1x8x128xf32>,
    return
  }
  func.func @transform_0(%arg0: i32) -> i32 {
    %c0_i32 = arith.constant 0 : i32
    %c0_i32_0 = arith.constant 0 : i32
    return %c0_i32 : i32
  }
  func.func @transform_1(%arg0: i32) -> (i32, i32, i32) {
    %c0_i32 = arith.constant 0 : i32
    %c0_i32_0 = arith.constant 0 : i32
    %c0_i32_1 = arith.constant 0 : i32
    return %c0_i32, %arg0, %c0_i32_0 : i32, i32, i32
  }
  func.func @transform_2(%arg0: i32) -> (i32, i32, i32) {
    %c0_i32 = arith.constant 0 : i32
    %c0_i32_0 = arith.constant 0 : i32
    %c0_i32_1 = arith.constant 0 : i32
    return %c0_i32, %arg0, %c0_i32_0 : i32, i32, i32
  }
}

</mosaic_0001>

<llo_original>
// kernel: pendulum_vf.1
$region0: #{pendulum_vf.1}
  #allocation0 [shape = 'u32[]', space=smem, size = 0x4, offset = 0x4, fixed_abs, tag = 'smem constant byte address 0x4 - core index']
  #allocation1 [shape = 'u32[72,128]{1,0:T(1,128)}', space=vmem, size = 0x9000, scoped, tag = 'internal scratch']
  #allocation2 [shape = 'f32[1]{0:T(128)S(6)}', space=smem, size = 0x200, scoped, tag = 'scoped memory for pendulum_vf.1']
  %s0 = inlined_call_operand.<no memory space> [shape: f32[1], index: 0, kind: input, shape index: {}]
  %s1 = inlined_call_operand.vmem [shape: f32[2,8,128], index: 1, kind: input, shape index: {}]
  %s2 = inlined_call_operand.vmem [shape: f32[2,8,128], index: 2, kind: output, shape index: {}]
  %s3 = sld [smem:[#allocation0]]
  $region18: #{pendulum_vf.1} parent=0
    _
  %s5 = ssub.s32 1, %s3
  %s6 = scalar_select 0, %s5, %s3
  %7 = sst [smem:[#allocation2]] %s0
  // Predicated region
  $region2: #{pendulum_vf.1} parent=0 // pred_check
    _
  $region3: #{pendulum_vf.1} parent=0 // pred_check_branch
    %9 = sbr.rel (0) target = $region5
  $region4: #{pendulum_vf.1} parent=0 // pred_region
    _
  $region5: #{pendulum_vf.1} parent=0 // pred_fallthru
    _
  // Predicated region
  $region6: #{pendulum_vf.1} parent=0 // pred_check
    _
  $region7: #{pendulum_vf.1} parent=0 // pred_check_branch
    %11 = sbr.rel (0) target = $region9
  $region8: #{pendulum_vf.1} parent=0 // pred_region
    _
  $region9: #{pendulum_vf.1} parent=0 // pred_fallthru
    _
  %s12 = sld [smem:[#allocation2]]
  %s13 = scalar_lea.vmem %s1, 8
  %v14 = vld [vmem:[%s13] sm:$0xff]
  %15 = vst [vmem:[%s2] sm:$0xff] %v14
  %v16 = vld [vmem:[%s1] sm:$0xff]
  %v17 = vand.u32 2147483647, %v16
  %vm18 = vcmp.le.f32.partialorder %v17, 0.7853982
  %vm19 = vcmp.lt.s32.totalorder %v16, 0
  %v20 = vand.u32 %v16, 2139095040
  %v21 = vshrl.u32 %v20, 23
  %v22 = vsub.s32 %v21, 127
  %v23 = vand.u32 2147483647, %v16
  %v24 = vand.u32 %v23, 8388607
  %v25 = vor.u32 %v24, 8388608
  %v26 = vsub.s32 0, %v25
  %v27 = vadd.s32 %v22, 1
  %vm28 = vcmp.gt.s32.totalorder %v27, 0
  %v29 = vsel %vm28, %v27, 0
  %v30 = vshrl.u32 %v29, 5
  %v31 = vand.u32 %v29, 31
  %v32 = vsub.s32 32, %v31
  %v33 = vshrl.u32 683565275, %v32
  %v34 = vshll.u32 683565275, %v31
  %v35 = vshrl.u32 2475754826, %v32
  %v36 = vor.u32 %v34, %v35
  %v37 = vshll.u32 2475754826, %v31
  %v38 = vshrl.u32 2131351028, %v32
  %v39 = vor.u32 %v37, %v38
  %v40 = vshll.u32 2131351028, %v31
  %v41 = vshrl.u32 2102212464, %v32
  %v42 = vor.u32 %v40, %v41
  %v43 = vshll.u32 2102212464, %v31
  %v44 = vshrl.u32 920167782, %v32
  %v45 = vor.u32 %v43, %v44
  %v46 = vshll.u32 920167782, %v31
  %v47 = vshrl.u32 1326507024, %v32
  %v48 = vor.u32 %v46, %v47
  %vm49 = vcmp.lt.s32.totalorder %v30, 1
  %vm50 = vcmp.lt.s32.totalorder %v30, 2
  %vm51 = vcmp.lt.s32.totalorder %v30, 3
  %vm52 = vcmp.lt.s32.totalorder %v30, 4
  %v53 = vsel %vm49, %v33, %v36
  %v54 = vsel %vm52, %v42, 2102212464
  %v55 = vsel %vm51, %v39, %v54
  %v56 = vsel %vm50, %v53, %v55
  %v57 = vsel %vm49, %v36, %v39
  %v58 = vsel %vm52, %v45, 920167782
  %v59 = vsel %vm51, %v42, %v58
  %v60 = vsel %vm50, %v57, %v59
  %v61 = vsel %vm49, %v39, %v42
  %v62 = vsel %vm52, %v48, 1326507024
  %v63 = vsel %vm51, %v45, %v62
  %v64 = vsel %vm50, %v61, %v63
  %v65 = vshll.u32 %v25, 8
  %v66 = vand.u32 %v65, 65535
  %v67 = vshrl.u32 %v65, 16
  %v68 = vand.u32 %v64, 65535
  %v69 = vshrl.u32 %v64, 16
  %v70 = vmul.u32 %v66, %v68
  %v71 = vmul.u32 %v66, %v69
  %v72 = vmul.u32 %v67, %v68
  %v73 = vmul.u32 %v67, %v69
  %v74 = vshll.u32 %v71, 16
  %v75 = vshrl.u32 %v71, 16
  %v76 = vshll.u32 %v72, 16
  %v77 = vshrl.u32 %v72, 16
  %vm78 = vc.u32 %v70, %v74
  %v79 = vsel %vm78, 1, 0
  %v80 = vadd.s32 %v70, %v74
  %v81 = vadd.s32 %v73, %v79
  %vm82 = vc.u32 %v80, %v76
  %v83 = vsel %vm82, 1, 0
  %v84 = vadd.s32 %v80, %v76
  %v85 = vadd.s32 %v81, %v83
  %v86 = vadd.s32 %v85, %v75
  %v87 = vadd.s32 %v86, %v77
  %v88 = vand.u32 %v65, 65535
  %v89 = vshrl.u32 %v65, 16
  %v90 = vand.u32 %v60, 65535
  %v91 = vshrl.u32 %v60, 16
  %v92 = vmul.u32 %v88, %v90
  %v93 = vmul.u32 %v88, %v91
  %v94 = vmul.u32 %v89, %v90
  %v95 = vmul.u32 %v89, %v91
  %v96 = vshll.u32 %v93, 16
  %v97 = vshrl.u32 %v93, 16
  %v98 = vshll.u32 %v94, 16
  %v99 = vshrl.u32 %v94, 16
  %vm100 = vc.u32 %v92, %v96
  %v101 = vsel %vm100, 1, 0
  %v102 = vadd.s32 %v92, %v96
  %v103 = vadd.s32 %v95, %v101
  %vm104 = vc.u32 %v102, %v98
  %v105 = vsel %vm104, 1, 0
  %v106 = vadd.s32 %v102, %v98
  %v107 = vadd.s32 %v103, %v105
  %v108 = vadd.s32 %v107, %v97
  %v109 = vadd.s32 %v108, %v99
  %v110 = vmul.u32 %v65, %v56
  %v111 = vadd.s32 %v87, %v106
  %vm112 = vc.u32 %v87, %v106
  %v113 = vadd.s32 %v109, 1
  %v114 = vsel %vm112, %v113, %v109
  %v115 = vadd.s32 %v110, %v114
  %v116 = vadd.s32 %v115, 536870912
  %v117 = vshrl.u32 %v116, 30
  %v118 = vshll.u32 %v117, 30
  %v119 = vsub.s32 %v115, %v118
  %vm120 = vcmp.lt.s32.totalorder %v119, 0
  %v121 = vsub.s32 0, %v119
  %v122 = vsel %vm120, %v121, %v119
  %v123 = vclz %v122
  %v124 = vsub.s32 %v123, 2
  %vm125 = vcmp.gt.s32.totalorder 0, %v124
  %v126 = vsel %vm125, 0, %v124
  %v127 = vsub.s32 32, %v126
  %v128 = vshll.u32 %v119, %v126
  %v129 = vshrl.u32 %v111, %v127
  %v130 = vor.u32 %v128, %v129
  %v131 = vsub.s32 4294967266, %v126
  %v132 = vadd.s32 %v131, 127
  %v133 = vshll.u32 %v132, 23
  %v134 = vor.u32 4788187, %v133
  %v135 = vand.u32 2147483647, %v134
  %v137 = vcvt.s32.f32 %v130
  %v138 = vmul.f32 %v137, %v135
  %v139 = vxor.u32 %v138, 2147483648
  %v140 = vsel %vm19, %v139, %v138
  %v141 = vsub.s32 4, %v117
  %v142 = vsel %vm19, %v141, %v117
  %v143 = vsel %vm18, %v16, %v140
  %v144 = vsel %vm18, 0, %v142
  %v145 = vmul.f32 %v143, %v143
  %v146 = vmul.f32 %v145, -0.001358992
  %v147 = vadd.f32 %v146, 0.041655596
  %v148 = vmul.f32 %v145, %v147
  %v149 = vadd.f32 %v148, -0.4999988
  %v150 = vmul.f32 %v145, %v149
  %v151 = vadd.f32 1.0, %v150
  %v152 = vmul.f32 %v143, %v143
  %v153 = vmul.f32 %v152, -0.00019511016
  %v154 = vadd.f32 %v153, 0.008332121
  %v155 = vmul.f32 %v152, %v154
  %v156 = vadd.f32 %v155, -0.16666654
  %v157 = vmul.f32 %v152, %v156
  %v158 = vadd.f32 %v157, 1.0
  %v159 = vmul.f32 %v158, %v143
  %vm160 = vweird.f32 %v16
  %v161 = vadd.s32 %v144, 3
  %v162 = vand.u32 %v161, 3
  %vm163 = vcmp.lt.s32.totalorder %v162, 2
  %vm164 = vcmp.eq.s32.totalorder %v162, 0
  %v165 = vxor.u32 %v159, 2147483648
  %v166 = vsel %vm164, %v151, %v165
  %vm167 = vcmp.eq.s32.totalorder %v162, 2
  %v168 = vxor.u32 %v151, 2147483648
  %v169 = vsel %vm167, %v168, %v159
  %v170 = vsel %vm163, %v166, %v169
  %v171 = vsel %vm160, nan, %v170
  %v172 = vstv %s12
  %v173 = vmul.f32 %v172, %v171
  %s174 = scalar_lea.vmem %s2, 8
  %175 = vst [vmem:[%s174] sm:$0xff] %v173
  // Predicated region
  $region10: #{pendulum_vf.1} parent=0 // pred_check
    _
  $region11: #{pendulum_vf.1} parent=0 // pred_check_branch
    %177 = sbr.rel (0) target = $region13
  $region12: #{pendulum_vf.1} parent=0 // pred_region
    _
  $region13: #{pendulum_vf.1} parent=0 // pred_fallthru
    _
  // Predicated region
  $region14: #{pendulum_vf.1} parent=0 // pred_check
    _
  $region15: #{pendulum_vf.1} parent=0 // pred_check_branch
    %179 = sbr.rel (0) target = $region17
  $region16: #{pendulum_vf.1} parent=0 // pred_region
    _
  $region17: #{pendulum_vf.1} parent=0 // pred_fallthru
    _

</llo_original>
